<compile_context>
chip_gen: v7x
topology: tpu7x:2x2x1
jax: 0.10.0
libtpu: 0.0.40
codegen_flags: <defaults>
</compile_context>

<pallas_src>
import functools
import math

import numpy as np

import jax
import jax.numpy as jnp
from jax.experimental import pallas as pl
from jax.experimental.pallas import tpu as pltpu


# -----------------------------------------------------------------------------
# Bilinear interpolation weights (PyTorch align_corners=False semantics).
# Built with numpy so they are baked compile-time constants.
# -----------------------------------------------------------------------------
def _bilinear_matrix_np(in_size: int, out_size: int) -> np.ndarray:
    """Returns W of shape (out_size, in_size) s.t. out = W @ in (1-D resize)."""
    scale = in_size / out_size
    real = (np.arange(out_size, dtype=np.float64) + 0.5) * scale - 0.5
    real = np.maximum(real, 0.0)  # PyTorch clamps negative source coords to 0
    i0 = np.minimum(np.floor(real).astype(np.int64), in_size - 1)
    i1 = np.minimum(i0 + 1, in_size - 1)
    w1 = real - i0
    w0 = 1.0 - w1
    mat = np.zeros((out_size, in_size), dtype=np.float64)
    rows = np.arange(out_size)
    np.add.at(mat, (rows, i0), w0)
    np.add.at(mat, (rows, i1), w1)
    return mat.astype(np.float32)


# -----------------------------------------------------------------------------
# Kernel: fused bilinear-resize + global-average-pool for a packed block of
# planes.  Since only the mean of the resized plane is consumed,
#   mean(Wy @ X @ Wx^T) == (colsum(Wy)/(Ho*Wo)) @ X @ colsum(Wx)
# => one lane-broadcast multiply + one lane reduce + one tiny matvec.
#   x_ref      : (P*h, w)   packed input planes, native dtype (widened on use)
#   v_ref      : (1, w)     column-interp colsum (lane broadcast)
#   u_ref      : (P, P*h)   block-diag row-interp colsum, pre-scaled 1/(Ho*Wo)
#   pooled_ref : (1, P, 1)  per-plane mean of the bilinearly resized plane
# -----------------------------------------------------------------------------
def _resize_pool_kernel(x_ref, v_ref, u_ref, pooled_ref):
    # (P*h, w) * (1, w) -> lane reduce -> (P*h, 1), f32 accumulation.
    s = jnp.sum(x_ref[...] * v_ref[...], axis=-1, keepdims=True)
    # Block-diagonal matvec: pooled[p] = sum_i u[i] * s[p*h + i]   -> (P, 1)
    pooled_ref[0] = jnp.dot(u_ref[...], s, preferred_element_type=jnp.float32)


def fused_resize_pool_nchw(images, out_hw, planes_per_block: int = 32,
                           max_block_bytes: int = 2 * 1024 * 1024):
    """mean(F.interpolate(images, out_hw, mode='bilinear'), axis=(-2, -1)).

    The resized (Ho, Wo) planes are never materialized anywhere (not even in
    VMEM): resize + pool are folded into two precomputed weight vectors, so
    the kernel is a clean HBM-bandwidth-bound weighted reduction.
    """
    n, c, h, w = images.shape
    ho, wo = out_hw
    nc = n * c

    # --- choose planes-per-grid-step ----------------------------------------
    # (a) cap per-step input block ~max_block_bytes (double-buffered, safe on
    #     every generation's scoped-VMEM defaults, incl. v7x's 64 MiB VMEM),
    # (b) give the "parallel" grid >= 2 steps when possible (v7x: 2 TCs),
    # (c) keep the (p_blk*h, w) block's second-minor dim a multiple of 8, or
    #     fall back to a single full block, to satisfy the (8, 128) tiling rule.
    bytes_per_plane = h * w * images.dtype.itemsize
    g = 8 // math.gcd(h, 8)                                    # plane granularity
    p_cap = max(g, (max_block_bytes // max(bytes_per_plane, 1) // g) * g)
    p_blk = max(1, min(planes_per_block, p_cap, nc))
    if pl.cdiv(nc, p_blk) < 2:                                 # try to split for v7x
        p_blk = max(1, min(p_blk, pl.cdiv(nc, 2)))
    if p_blk < nc:
        p_blk = min(nc, max(g, ((p_blk + g - 1) // g) * g))
    num_blocks = pl.cdiv(nc, p_blk)

    # --- precomputed pooling weights (compile-time numpy constants) ---------
    wy = _bilinear_matrix_np(h, ho).astype(np.float64)         # (Ho, h)
    wx = _bilinear_matrix_np(w, wo).astype(np.float64)         # (Wo, w)
    u = (wy.sum(axis=0) / float(ho * wo)).astype(np.float32)   # (h,)
    v = wx.sum(axis=0).astype(np.float32)                      # (w,)
    v_row = jnp.asarray(v.reshape(1, w))                       # (1, w)
    u_blkdiag = jnp.asarray(                                   # (p_blk, p_blk*h)
        np.kron(np.eye(p_blk, dtype=np.float32), u.reshape(1, h)))

    # Free metadata reshape (NCHW is contiguous): no HBM copy, no pad, no cast.
    planes2d = images.reshape(nc * h, w)

    x_block_bytes = p_blk * bytes_per_plane
    tmp_bytes = p_blk * h * w * 4          # widened product temporary
    u_bytes = p_blk * p_blk * h * 4
    vmem_limit = int(min(48 << 20,
                         max(16 << 20,
                             2 * x_block_bytes + 2 * tmp_bytes
                             + 2 * u_bytes + (2 << 20))))

    pooled = pl.pallas_call(
        _resize_pool_kernel,
        out_shape=jax.ShapeDtypeStruct((num_blocks, p_blk, 1), jnp.float32),
        grid=(num_blocks,),
        in_specs=[
            pl.BlockSpec((p_blk * h, w), lambda i: (i, 0)),
            pl.BlockSpec((1, w), lambda i: (0, 0)),
            pl.BlockSpec((p_blk, p_blk * h), lambda i: (0, 0)),
        ],
        out_specs=pl.BlockSpec((1, p_blk, 1), lambda i: (i, 0, 0)),
        compiler_params=pltpu.CompilerParams(
            dimension_semantics=("parallel",),
            vmem_limit_bytes=vmem_limit),
    )(planes2d, v_row, u_blkdiag)

    # The tail block's out-of-range planes produce garbage pooled entries --
    # drop them here so nothing downstream (the head) ever consumes them.
    return pooled.reshape(-1)[:nc].reshape(n, c)


# -----------------------------------------------------------------------------
# Synthetic "emonet" head on the pooled (N, C) features.  Only a few hundred
# bytes / a few kFLOPs: a dedicated pallas_call would cost more in launch
# overhead + an HBM round trip than the matmuls, so it stays in plain jnp.
# -----------------------------------------------------------------------------
def emonet_head(pooled, params):
    feat = jnp.maximum(
        jnp.dot(pooled, params["w1"],
                precision=jax.lax.Precision.HIGHEST) + params["b1"], 0.0)
    heads = jnp.dot(feat, params["wh"], precision=jax.lax.Precision.HIGHEST)
    return feat, heads


# -----------------------------------------------------------------------------
# EmoNetLoss (forward only): interpolate to (256, 256) then run "emonet".
# -----------------------------------------------------------------------------
class EmoNetLossPallas:
    LAST_FEATURE_SIZE = 256   # matches EmoNetLoss.last_feature_size
    N_EXPR = 8                # EmoNet default expression classes
    SIZE = (256, 256)         # matches EmoNetLoss.size

    def __init__(self, in_channels: int = 3):
        key = jax.random.PRNGKey(42)
        k1, k2, k3, k4, k5 = jax.random.split(key, 5)
        f = self.LAST_FEATURE_SIZE
        # Deterministic synthetic parameters (no checkpoint load).
        wv = jax.random.normal(k3, (f, 1), jnp.float32) * 0.05
        wa = jax.random.normal(k4, (f, 1), jnp.float32) * 0.05
        we = jax.random.normal(k5, (f, self.N_EXPR), jnp.float32) * 0.05
        self.params = {
            "w1": jax.random.normal(k1, (in_channels, f), jnp.float32) * 0.1,
            "b1": jax.random.normal(k2, (1, f), jnp.float32) * 0.01,
            # Fused [valence | arousal | expression] head weights -> one matmul.
            "wh": jnp.concatenate([wv, wa, we], axis=1),          # (F, 2+E)
        }

    @functools.partial(jax.jit, static_argnums=0)
    def forward(self, images):
        # images: NCHW (any float dtype; the kernel widens to f32 in-register)
        pooled = fused_resize_pool_nchw(images, self.SIZE)        # (N, C)
        feat2, heads = emonet_head(pooled, self.params)
        return {
            "emo_feat_2": feat2,
            "valence": heads[:, 0:1],
            "arousal": heads[:, 1:2],
            "expression": heads[:, 2:],
        }


if __name__ == "__main__":
    key = jax.random.PRNGKey(0)
    images = jax.random.normal(key, (2, 3, 16, 16), dtype=jnp.float32)

    loss_module = EmoNetLossPallas(in_channels=3)
    out = loss_module.forward(images)
    out = jax.tree_util.tree_map(jax.block_until_ready, out)

    assert out["emo_feat_2"].shape == (2, 256)
    assert out["valence"].shape == (2, 1)
    assert out["arousal"].shape == (2, 1)
    assert out["expression"].shape == (2, 8)

    # --- correctness: fused resize+pool kernel vs explicit-resize reference --
    wy_ref = jnp.asarray(_bilinear_matrix_np(16, 256))            # (256, 16)
    wx_ref = jnp.asarray(_bilinear_matrix_np(16, 256))            # (256, 16)
    resized_ref = jnp.einsum("oh,nchw,vw->ncov", wy_ref, images, wx_ref,
                             precision=jax.lax.Precision.HIGHEST)
    pooled_ref = resized_ref.mean(axis=(2, 3))                    # (N, C)
    pooled_kernel = fused_resize_pool_nchw(images, (256, 256))
    assert jnp.allclose(pooled_kernel, pooled_ref, atol=1e-4, rtol=1e-2), \
        "fused resize+pool mismatch vs reference"

    # --- correctness: head path ---------------------------------------------
    p = loss_module.params
    feat_ref = jnp.maximum(
        jnp.dot(pooled_ref, p["w1"], precision=jax.lax.Precision.HIGHEST)
        + p["b1"], 0.0)
    heads_ref = jnp.dot(feat_ref, p["wh"], precision=jax.lax.Precision.HIGHEST)
    assert jnp.allclose(out["emo_feat_2"], feat_ref, atol=1e-4, rtol=1e-2), \
        "head feature mismatch vs reference"
    assert jnp.allclose(
        jnp.concatenate([out["valence"], out["arousal"], out["expression"]],
                        axis=1),
        heads_ref, atol=1e-4, rtol=1e-2), "head output mismatch vs reference"

    print("KERNEL_OK")
</pallas_src>

<mosaic_0001>
module attributes {stable_mosaic.version = 11 : i64} {
  func.func @_resize_pool_kernel(%arg0: i32, %arg1: memref<48x16xf32, #tpu.memory_space<vmem>>, %arg2: memref<1x16xf32, #tpu.memory_space<vmem>>, %arg3: memref<3x48xf32, #tpu.memory_space<vmem>>, %arg4: memref<1x3x1xf32, #tpu.memory_space<vmem>>) attributes {dimension_semantics = [#tpu.dimension_semantics<parallel>], iteration_bounds = array<i64: 2>, scalar_prefetch = 0 : i64, scratch_operands = 0 : i64, tpu.core_type = #tpu.core_type<tc>, window_params = [{transform_indices = @transform_0, window_bounds = array<i64: 48, 16>}, {pipeline_mode = #tpu.pipeline_mode<synchronous>, transform_indices = @transform_1, window_bounds = array<i64: 1, 16>}, {pipeline_mode = #tpu.pipeline_mode<synchronous>, transform_indices = @transform_2, window_bounds = array<i64: 3, 48>}, {transform_indices = @transform_3, window_bounds = array<i64: 1, 3, 1>}]} {
    %c0 = arith.constant 0 : index
    %c0_0 = arith.constant 0 : index
    %0 = vector.load %arg1[%c0, %c0_0] : memref<48x16xf32, #tpu.memory_space<vmem>>, vector<48x16xf32>
    %c0_1 = arith.constant 0 : index
    %c0_2 = arith.constant 0 : index
    %1 = vector.load %arg2[%c0_1, %c0_2] : memref<1x16xf32, #tpu.memory_space<vmem>>, vector<1x16xf32>
    %2 = vector.broadcast %1 : vector<1x16xf32> to vector<48x16xf32>
    %3 = arith.mulf %0, %2 : vector<48x16xf32>
    %cst = arith.constant dense<0.000000e+00> : vector<48xf32>
    %4 = vector.multi_reduction <add>, %3, %cst [1] : vector<48x16xf32> to vector<48xf32>
    %5 = vector.shape_cast %4 : vector<48xf32> to vector<48x1xf32>
    %c0_3 = arith.constant 0 : index
    %c0_4 = arith.constant 0 : index
    %6 = vector.load %arg3[%c0_3, %c0_4] : memref<3x48xf32, #tpu.memory_space<vmem>>, vector<3x48xf32>
    %cst_5 = arith.constant dense<0.000000e+00> : vector<3x1xf32>
    %7 = tpu.matmul %6, %5, %cst_5 {dimension_numbers = #tpu.dot_dimension_numbers<[1], [0], [0], [1], [0, 0, 1, 1], [], []>} : vector<3x48xf32>, vector<48x1xf32>, vector<3x1xf32> -> vector<3x1xf32>
    %c0_6 = arith.constant 0 : index
    %c0_7 = arith.constant 0 : index
    %c0_8 = arith.constant 0 : index
    %8 = vector.load %arg4[%c0_6, %c0_7, %c0_8] : memref<1x3x1xf32, #tpu.memory_space<vmem>>, vector<1x3x1xf32>
    %9 = vector.shape_cast %8 : vector<1x3x1xf32> to vector<3x1xf32>
    %10 = vector.shape_cast %7 : vector<3x1xf32> to vector<1x3x1xf32>
    tpu.vector_store %arg4[%c0_6, %c0_7, %c0_8], %10 {strides = array<i32>} : memref<1x3x1xf32, #tpu.memory_space<vmem>>, vector<1x3x1xf32>,
    return
  }
  func.func @transform_0(%arg0: i32) -> (i32, i32) {
    %c0_i32 = arith.constant 0 : i32
    %c0_i32_0 = arith.constant 0 : i32
    return %arg0, %c0_i32 : i32, i32
  }
  func.func @transform_1(%arg0: i32) -> (i32, i32) {
    %c0_i32 = arith.constant 0 : i32
    %c0_i32_0 = arith.constant 0 : i32
    %c0_i32_1 = arith.constant 0 : i32
    return %c0_i32, %c0_i32_0 : i32, i32
  }
  func.func @transform_2(%arg0: i32) -> (i32, i32) {
    %c0_i32 = arith.constant 0 : i32
    %c0_i32_0 = arith.constant 0 : i32
    %c0_i32_1 = arith.constant 0 : i32
    return %c0_i32, %c0_i32_0 : i32, i32
  }
  func.func @transform_3(%arg0: i32) -> (i32, i32, i32) {
    %c0_i32 = arith.constant 0 : i32
    %c0_i32_0 = arith.constant 0 : i32
    %c0_i32_1 = arith.constant 0 : i32
    return %arg0, %c0_i32, %c0_i32_0 : i32, i32, i32
  }
}

</mosaic_0001>

<llo_original>
// kernel: forward.1
$region0: #{forward.1}
  #allocation0 [shape = 'u32[]', space=smem, size = 0x4, offset = 0x4, fixed_abs, tag = 'smem constant byte address 0x4 - core index']
  #allocation1 [shape = 'u32[144,128]{1,0:T(1,128)}', space=vmem, size = 0x12000, scoped, tag = 'internal scratch']
  %s0 = inlined_call_operand.hbm [shape: f32[96,16], index: 0, kind: input, shape index: {}]
  %s1 = inlined_call_operand.vmem [shape: f32[1,16], index: 1, kind: input, shape index: {}]
  %s2 = inlined_call_operand.vmem [shape: f32[3,48], index: 2, kind: input, shape index: {}]
  %s3 = inlined_call_operand.vmem [shape: f32[2,3,1], index: 3, kind: output, shape index: {}]
  %s4 = sld [smem:[#allocation0]]
  $region49: #{forward.1} parent=0
    _
  %s6 = ssub.s32 1, %s4
  %s7 = scalar_select 0, %s6, %s4
  $region1: #{forward.1} parent=0
    #allocation2 [shape = 'u8[49152]{0}', space=vmem, size = 0xc000, scoped, tag = 'input window, operand 0']
    #allocation3 [shape = 's32[2]{0}', space=sflag, size = 0x8, scoped, tag = 'scoped memory for forward.1']
    %8 = vsyncpa [#allocation3], 0
    %s9 = scalar_lea.sflag [#allocation3], 1
    %10 = vsyncpa %s9, 0
    loop: start=0, step=1, limit=4
    $region2: #{forward.1} parent=1 // loop_pre_header
      _
    $region3: #{forward.1} parent=1 // loop_header
      %s12 = sphi 0, %s16
      %p13 = scmp.ge.s32.totalorder %s12, 4
      %s22 = sphi 0, %s24
      %s25 = sphi 0, %s22
      %s26 = sphi 0, %s25
      %s42 = sphi 0, %s26
      %s46 = sphi 0, %s46
      %s48 = sphi 0, %s46
      %s49 = sphi 0, %s48
      %s63 = sphi 0, %s49
      %s67 = sphi 0, %s67
      %s69 = sphi 0, %s67
      %s70 = sphi 0, %s69
      %s84 = sphi 0, %s70
      %s90 = sphi 0, %s92
      %s93 = sphi 0, %s90
      %s94 = sphi 0, %s93
      %s110 = sphi 0, %s94
    $region4: #{forward.1} parent=1 // loop_header_branch
      %15 = sbr.rel (%p13) target = $region8
    $region5: #{forward.1} parent=1 // loop_body
      %s17 = ssub.s32 %s12, 1
      %s18 = ssub.s32 %s12, 2
      %s19 = sadd.s32 %s12, 1
      %s20 = ssub.s32 %s12, %s19
      %p21 = scmp.eq.s32.totalorder %s20, 0
      %s23 = sadd.s32 %s22, 1
      %s24 = scalar_select %p21, %s22, %s23
      %p27 = pneg %p21
      %p28 = scmp.eq.s32.totalorder %s12, 1
      %p29 = por %p27, %p28
      %p30 = scmp.ne.s32.totalorder %s22, %s25
      %p31 = scmp.eq.s32.totalorder %s12, 0
      %p32 = por %p30, %p31
      %p33 = scmp.ne.s32.totalorder %s22, %s25
      %p34 = scmp.eq.s32.totalorder %s17, 1
      %p35 = por %p33, %p34
      %p36 = scmp.ne.s32.totalorder %s25, %s26
      %p37 = scmp.eq.s32.totalorder %s17, 0
      %p38 = por %p36, %p37
      %p39 = scmp.ne.s32.totalorder %s25, %s26
      %p40 = scmp.eq.s32.totalorder %s18, 1
      %p41 = por %p39, %p40
      %p43 = scmp.ne.s32.totalorder %s26, %s42
      %p44 = scmp.eq.s32.totalorder %s18, 0
      %p45 = por %p43, %p44
      %s47 = sadd.s32 %s46, 1
      %p50 = scmp.eq.s32.totalorder %s12, 1
      %p51 = scmp.ne.s32.totalorder %s46, %s48
      %p52 = scmp.eq.s32.totalorder %s12, 0
      %p53 = por %p51, %p52
      %p54 = scmp.ne.s32.totalorder %s46, %s48
      %p55 = scmp.eq.s32.totalorder %s17, 1
      %p56 = por %p54, %p55
      %p57 = scmp.ne.s32.totalorder %s48, %s49
      %p58 = scmp.eq.s32.totalorder %s17, 0
      %p59 = por %p57, %p58
      %p60 = scmp.ne.s32.totalorder %s48, %s49
      %p61 = scmp.eq.s32.totalorder %s18, 1
      %p62 = por %p60, %p61
      %p64 = scmp.ne.s32.totalorder %s49, %s63
      %p65 = scmp.eq.s32.totalorder %s18, 0
      %p66 = por %p64, %p65
      %s68 = sadd.s32 %s67, 1
      %p71 = scmp.eq.s32.totalorder %s12, 1
      %p72 = scmp.ne.s32.totalorder %s67, %s69
      %p73 = scmp.eq.s32.totalorder %s12, 0
      %p74 = por %p72, %p73
      %p75 = scmp.ne.s32.totalorder %s67, %s69
      %p76 = scmp.eq.s32.totalorder %s17, 1
      %p77 = por %p75, %p76
      %p78 = scmp.ne.s32.totalorder %s69, %s70
      %p79 = scmp.eq.s32.totalorder %s17, 0
      %p80 = por %p78, %p79
      %p81 = scmp.ne.s32.totalorder %s69, %s70
      %p82 = scmp.eq.s32.totalorder %s18, 1
      %p83 = por %p81, %p82
      %p85 = scmp.ne.s32.totalorder %s70, %s84
      %p86 = scmp.eq.s32.totalorder %s18, 0
      %p87 = por %p85, %p86
      %s88 = ssub.s32 %s12, %s19
      %p89 = scmp.eq.s32.totalorder %s88, 0
      %s91 = sadd.s32 %s90, 1
      %s92 = scalar_select %p89, %s90, %s91
      %p95 = pneg %p89
      %p96 = scmp.eq.s32.totalorder %s12, 1
      %p97 = por %p95, %p96
      %p98 = scmp.ne.s32.totalorder %s90, %s93
      %p99 = scmp.eq.s32.totalorder %s12, 0
      %p100 = por %p98, %p99
      %p101 = scmp.ne.s32.totalorder %s90, %s93
      %p102 = scmp.eq.s32.totalorder %s17, 1
      %p103 = por %p101, %p102
      %p104 = scmp.ne.s32.totalorder %s93, %s94
      %p105 = scmp.eq.s32.totalorder %s17, 0
      %p106 = por %p104, %p105
      %p107 = scmp.ne.s32.totalorder %s93, %s94
      %p108 = scmp.eq.s32.totalorder %s18, 1
      %p109 = por %p107, %p108
      %p111 = scmp.ne.s32.totalorder %s94, %s110
      %p112 = scmp.eq.s32.totalorder %s18, 0
      %p113 = por %p111, %p112
      %p114 = scmp.le.s32.totalorder 1, %s12
      %p115 = scmp.lt.s32.totalorder %s12, 3
      %p116 = pnand %p114, %p115
      %p117 = pneg %p116
      // Predicated region
      $region9: #{forward.1} parent=5 // pred_check
        _
      $region10: #{forward.1} parent=5 // pred_check_branch
        %119 = sbr.rel (%p116) target = $region12
      $region11: #{forward.1} parent=5 // pred_region
        %s120 = ssub.s32 %s12, 1
        // Predicated region
        $region13: #{forward.1} parent=11 // pred_check
          %p121 = pneg %p59
        $region14: #{forward.1} parent=11 // pred_check_branch
          %123 = sbr.rel (%p121) target = $region16
        $region15: #{forward.1} parent=11 // pred_region
          _
        $region16: #{forward.1} parent=11 // pred_fallthru
          _
        // Predicated region
        $region17: #{forward.1} parent=11 // pred_check
          %p124 = pneg %p80
        $region18: #{forward.1} parent=11 // pred_check_branch
          %126 = sbr.rel (%p124) target = $region20
        $region19: #{forward.1} parent=11 // pred_region
          _
        $region20: #{forward.1} parent=11 // pred_fallthru
          _
      $region12: #{forward.1} parent=5 // pred_fallthru
        _
      %p127 = scmp.lt.s32.totalorder %s12, 2
      // Predicated region
      $region21: #{forward.1} parent=5 // pred_check
        %p128 = pneg %p127
      $region22: #{forward.1} parent=5 // pred_check_branch
        %130 = sbr.rel (%p128) target = $region24
      $region23: #{forward.1} parent=5 // pred_region
        // Predicated region
        $region25: #{forward.1} parent=23 // pred_check
          %p131 = pneg %p32
        $region26: #{forward.1} parent=23 // pred_check_branch
          %133 = sbr.rel (%p131) target = $region28
        $region27: #{forward.1} parent=23 // pred_region
          %s134 = sand.u32 %s22, 1
          %s135 = scalar_lea.sflag [#allocation3], %s134
          %s136 = sand.u32 %s22, 1
          %s137 = smul.addr %s136, 48
          %s138 = scalar_lea.vmem [#allocation2], %s137
          %s139 = smul.u32 6, %s12
          %s141 = ssub.s32 768, 768
          %142 = vsyncadd %s135, %s141
          %s143 = smul.addr %s139, 128
          %s144 = scalar_lea.hbm %s0, %s143
          %s145 = sshll.u32 %s138, 4
          %s146 = int_to_ptr.vmem [resolvable:$true] %s145
          %151 = dma.hbm_to_vmem [thread:$0]  %s144, 768, %s146, %s135, 128, 128, 8
        $region28: #{forward.1} parent=23 // pred_fallthru
          _
      $region24: #{forward.1} parent=5 // pred_fallthru
        _
      %p152 = scmp.le.s32.totalorder 1, %s12
      %p153 = scmp.lt.s32.totalorder %s12, 3
      %p154 = pnand %p152, %p153
      %p155 = pneg %p154
      // Predicated region
      $region29: #{forward.1} parent=5 // pred_check
        _
      $region30: #{forward.1} parent=5 // pred_check_branch
        %157 = sbr.rel (%p154) target = $region32
      $region31: #{forward.1} parent=5 // pred_region
        %s158 = ssub.s32 %s12, 1
        %s159 = sand.u32 %s25, 1
        %s160 = scalar_lea.sflag [#allocation3], %s159
        %s161 = sand.u32 %s25, 1
        %s162 = smul.addr %s161, 48
        %s163 = scalar_lea.vmem [#allocation2], %s162
        // Predicated region
        $region33: #{forward.1} parent=31 // pred_check
          %p164 = pneg %p38
        $region34: #{forward.1} parent=31 // pred_check_branch
          %166 = sbr.rel (%p164) target = $region36
        $region35: #{forward.1} parent=31 // pred_region
          %167 = dma.done %s160, 768
        $region36: #{forward.1} parent=31 // pred_fallthru
          _
        %s168 = sand.u32 %s25, 1
        %s169 = scalar_lea.sflag [#allocation3], %s168
        %s170 = sand.u32 %s25, 1
        %s171 = smul.addr %s170, 48
        %s172 = scalar_lea.vmem [#allocation2], %s171
        %p173 = pneg %p38
        %p174 = pneg %p35
        %p175 = pneg %p59
        %p176 = pneg %p56
        %p177 = pneg %p80
        %p178 = pneg %p77
        %p179 = pneg %p106
        %p180 = pneg %p103
        %p181 = scmp.lt.s32.totalorder %s17, 1
        %s182 = scalar_select %p181, %s17, 1
        %s183 = smul.addr %s182, 4
        %s184 = scalar_lea.vmem %s3, %s183
        %s185 = smul.u32 6, %s17
        %p186 = scmp.lt.s32.totalorder %s17, 1
        %s187 = scalar_select %p186, %s17, 1
        %s188 = smul.addr %s187, 4
        %s189 = scalar_lea.vmem %s3, %s188
        %v190 = vld [vmem:[%s163] sm:$0xff]
        %v191 = vld [vmem:[%s163 + $0x8] sm:$0xff]
        %v192 = vld [vmem:[%s163 + $0x10] sm:$0xff]
        %v193 = vld [vmem:[%s163 + $0x18] sm:$0xff]
        %v194 = vld [vmem:[%s163 + $0x20] sm:$0xff]
        %v195 = vld [vmem:[%s163 + $0x28] sm:$0xff]
        %v196 = vld [vmem:[%s1] sm:$0x1]
        %v198 = vlaneseq
        %v199 = vshrl.u32 %v198, 7
        %v200 = vsub.s32 0, %v199
        %v201 = vrot.slane %v196, %v200
        %v203 = vmul.f32 %v190, %v201
        %v204 = vmul.f32 %v191, %v201
        %v205 = vmul.f32 %v192, %v201
        %v206 = vmul.f32 %v193, %v201
        %v207 = vmul.f32 %v194, %v201
        %v208 = vmul.f32 %v195, %v201
        %vm209 = vcmask 130048
        %v210 = vsel %vm209, %v203, 0.0
        %211 = vadd.xlane.f32.xlu0 %v210
        %v212 = vpop.xlane.xlu0 %211
        %v213 = vsel %vm209, %v204, 0.0
        %214 = vadd.xlane.f32.xlu0 %v213
        %v215 = vpop.xlane.xlu0 %214
        %v216 = vsel %vm209, %v205, 0.0
        %217 = vadd.xlane.f32.xlu0 %v216
        %v218 = vpop.xlane.xlu0 %217
        %v219 = vsel %vm209, %v206, 0.0
        %220 = vadd.xlane.f32.xlu0 %v219
        %v221 = vpop.xlane.xlu0 %220
        %v222 = vsel %vm209, %v207, 0.0
        %223 = vadd.xlane.f32.xlu0 %v222
        %v224 = vpop.xlane.xlu0 %223
        %v225 = vsel %vm209, %v208, 0.0
        %226 = vadd.xlane.f32.xlu0 %v225
        %v227 = vpop.xlane.xlu0 %226
        %v228 = vld [vmem:[%s2] sm:$0x7]
        %vm229 = vcmask 392192
        %v231 = vsel %vm229, %v228, 0
        %233 = vmatprep.subr.mxu0 0.0
        %234 = vmatpush1.msra.mxu0 %v212
        %235 = vmatprep.subr.mxu0 0.0
        %236 = vmatpush1.msra.mxu0 %v215
        %237 = vmatprep.subr.mxu0 0.0
        %238 = vmatpush1.msra.mxu0 %v218
        %239 = vmatprep.subr.mxu0 0.0
        %240 = vmatpush1.msra.mxu0 %v221
        %241 = vmatprep.subr.mxu0 0.0
        %242 = vmatpush1.msra.mxu0 %v224
        %243 = vmatprep.subr.mxu0 0.0
        %244 = vmatpush1.msra.mxu0 %v227
        %245 = vmatprep.subr.mxu0 0.0
        %246 = vmatpush1.msra.mxu0 0.0
        %247 = vmatprep.subr.mxu0 0.0
        %248 = vmatpush1.msra.mxu0 0.0
        %249 = vmatprep.subr.mxu0 0.0
        %250 = vmatpush1.msra.mxu0 0.0
        %251 = vmatprep.subr.mxu0 0.0
        %252 = vmatpush1.msra.mxu0 0.0
        %253 = vmatprep.subr.mxu0 0.0
        %254 = vmatpush1.msra.mxu0 0.0
        %255 = vmatprep.subr.mxu0 0.0
        %256 = vmatpush1.msra.mxu0 0.0
        %257 = vmatprep.subr.mxu0 0.0
        %258 = vmatpush1.msra.mxu0 0.0
        %259 = vmatprep.subr.mxu0 0.0
        %260 = vmatpush1.msra.mxu0 0.0
        %261 = vmatprep.subr.mxu0 0.0
        %262 = vmatpush1.msra.mxu0 0.0
        %263 = vmatprep.subr.mxu0 0.0
        %264 = vmatpush1.msra.mxu0 0.0
        %265 = vmatprep.subr.mxu0 0.0
        %266 = vmatpush1.msra.mxu0 0.0
        %267 = vmatprep.subr.mxu0 0.0
        %268 = vmatpush1.msra.mxu0 0.0
        %269 = vmatprep.subr.mxu0 0.0
        %270 = vmatpush1.msra.mxu0 0.0
        %271 = vmatprep.subr.mxu0 0.0
        %272 = vmatpush1.msra.mxu0 0.0
        %273 = vmatprep.subr.mxu0 0.0
        %274 = vmatpush1.msra.mxu0 0.0
        %275 = vmatprep.subr.mxu0 0.0
        %276 = vmatpush1.msra.mxu0 0.0
        %277 = vmatprep.subr.mxu0 0.0
        %278 = vmatpush1.msra.mxu0 0.0
        %279 = vmatprep.subr.mxu0 0.0
        %280 = vmatpush1.msra.mxu0 0.0
        %281 = vmatprep.subr.mxu0 0.0
        %282 = vmatpush1.msra.mxu0 0.0
        %283 = vmatprep.subr.mxu0 0.0
        %284 = vmatpush1.msra.mxu0 0.0
        %285 = vmatprep.subr.mxu0 0.0
        %286 = vmatpush1.msra.mxu0 0.0
        %287 = vmatprep.subr.mxu0 0.0
        %288 = vmatpush1.msra.mxu0 0.0
        %289 = vmatprep.subr.mxu0 0.0
        %290 = vmatpush1.msra.mxu0 0.0
        %291 = vmatprep.subr.mxu0 0.0
        %292 = vmatpush1.msra.mxu0 0.0
        %293 = vmatprep.subr.mxu0 0.0
        %294 = vmatpush1.msra.mxu0 0.0
        %295 = vmatprep.subr.mxu0 0.0
        %296 = vmatpush1.msra.mxu0 0.0
        %297 = vmatprep.mubr.f32.mxu0 0.0
        %298 = vmatmul.mubr.f32.gmra.mrb[0].mxu0 %v231
        %v299 = vpop.f32.mrb[0].mxu0
        %v300 = vadd.f32 0.0, %v299
        %v301 = vpop.f32.mrb[0].mxu0
        %302 = vdwg.mxu0
        %vm303 = vcmask 2048
        %304 = vst.msk [vmem:[%s189] sm:$0x7] %vm303, %v300
        %p305 = scmp.lt.s32.totalorder %s17, 1
        %s306 = scalar_select %p305, %s17, 1
        %s307 = smul.addr %s306, 4
        %s308 = scalar_lea.vmem %s3, %s307
        // Predicated region
        $region37: #{forward.1} parent=31 // pred_check
          %p309 = pneg %p103
        $region38: #{forward.1} parent=31 // pred_check_branch
          %311 = sbr.rel (%p309) target = $region40
        $region39: #{forward.1} parent=31 // pred_region
          _
        $region40: #{forward.1} parent=31 // pred_fallthru
          _
      $region32: #{forward.1} parent=5 // pred_fallthru
        _
      %p312 = scmp.le.s32.totalorder 2, %s12
      // Predicated region
      $region41: #{forward.1} parent=5 // pred_check
        %p313 = pneg %p312
      $region42: #{forward.1} parent=5 // pred_check_branch
        %315 = sbr.rel (%p313) target = $region44
      $region43: #{forward.1} parent=5 // pred_region
        %s316 = ssub.s32 %s12, 2
        // Predicated region
        $region45: #{forward.1} parent=43 // pred_check
          %p317 = pneg %p109
        $region46: #{forward.1} parent=43 // pred_check_branch
          %319 = sbr.rel (%p317) target = $region48
        $region47: #{forward.1} parent=43 // pred_region
          %p320 = scmp.lt.s32.totalorder %s18, 1
          %s321 = scalar_select %p320, %s18, 1
          %s322 = smul.addr %s321, 4
          %s323 = scalar_lea.vmem %s3, %s322
        $region48: #{forward.1} parent=43 // pred_fallthru
          _
      $region44: #{forward.1} parent=5 // pred_fallthru
        _
    $region6: #{forward.1} parent=1 // loop_footer
      %s16 = sadd.s32 1, %s12
    $region7: #{forward.1} parent=1 // loop_footer_branch
      %11 = sbr.rel target = $region3
    $region8: #{forward.1} parent=1 // loop_exit
      _
    %324 = vsyncpa [#allocation3], 1
    %s325 = scalar_lea.sflag [#allocation3], 1
    %326 = vsyncpa %s325, 1

</llo_original>
